<compile_context>
chip_gen: v7x
topology: tpu7x:2x2x1
jax: 0.10.0
libtpu: 0.0.40
codegen_flags: <defaults>
</compile_context>

<pallas_src>
import functools

import jax
import jax.numpy as jnp
from jax import lax
from jax.experimental import pallas as pl
from jax.experimental.pallas import tpu as pltpu

# ----------------------------- config ("args") ------------------------------
BATCH = 2
CHANNELS = 4          # args.feat_size[0]  (e.g. one-hot DNA)
SEQ = 16              # input sequence length
CONV_FILTERS = 32     # args.conv_filters
CONV_K = 5            # args.conv_kernelsize
POOL = 2              # args.maxpool_size
STRIDE = 2            # args.maxpool_strides
LSTM_H = 32           # args.lstm_outnodes
FC1 = 16              # args.linear1_nodes

L_CONV = SEQ - CONV_K + 1                 # valid conv output length (= 12)
T_POOL = (L_CONV - POOL) // STRIDE + 1    # pooled sequence length / LSTM steps (= 6)
assert (T_POOL - 1) * STRIDE + POOL <= L_CONV  # pooling windows stay in bounds

KC = CONV_K * CHANNELS                    # im2col contraction depth


def _mxu_dot(a, b):
    """bf16 MXU operands, f32 accumulation (single MXU pass)."""
    return jnp.dot(a.astype(jnp.bfloat16), b.astype(jnp.bfloat16),
                   preferred_element_type=jnp.float32)


def _hi_dot(a, b):
    return jnp.dot(a, b, preferred_element_type=jnp.float32,
                   precision=lax.Precision.HIGHEST)


def _reorder_gates(w):
    """Permute last-dim gate blocks from PyTorch [i, f, g, o] to [i, f, o, g]."""
    H = LSTM_H
    return jnp.concatenate([w[..., :2 * H], w[..., 3 * H:4 * H],
                            w[..., 2 * H:3 * H]], axis=-1)


# ------------------------------ fused Pallas kernel --------------------------
def tf_hybrid_kernel(patches_ref, wc_ref, bc_ref, wih_ref, whh_ref, bl_ref,
                     w1_ref, b1_ref, w2_ref, b2_ref, o_ref, *,
                     b_tile, apply_sigmoid):
    """One batch tile per grid step.

    patches_ref: (1, POOL*T_POOL*b_tile, K*C)  rows ordered (phase, t, b)
    wc_ref : (K*C, F)   bc_ref: (1, F)
    wih_ref: (F, 4H)    whh_ref: (H, 4H)   bl_ref: (1, 4H)   (gate order i,f,o,g)
    w1_ref : (H, FC1)   b1_ref: (1, FC1)   w2_ref: (FC1, 1)  b2_ref: (1, 1)
    o_ref  : (1, b_tile, 1)
    """
    tb = T_POOL * b_tile
    patches = patches_ref[0]                                  # (POOL*tb, K*C)

    # Weights read once per grid step; MXU operands cast to bf16 once.
    wc = wc_ref[...].astype(jnp.bfloat16)
    wih = wih_ref[...].astype(jnp.bfloat16)
    whh = whh_ref[...].astype(jnp.bfloat16)
    w1 = w1_ref[...].astype(jnp.bfloat16)
    w2 = w2_ref[...].astype(jnp.bfloat16)

    # ---- featurizer: Conv1d over every pooled tap as ONE matmul + ReLU ------
    conv = _mxu_dot(patches, wc) + bc_ref[...]                # (POOL*tb, F)
    conv = jnp.maximum(conv, 0.0)

    # ---- MaxPool1d: elementwise max across the POOL phase blocks ------------
    pooled = conv[0:tb, :]                                    # (tb, F), t-major
    for p in range(1, POOL):
        pooled = jnp.maximum(pooled, conv[p * tb:(p + 1) * tb, :])

    # ---- classifier: LSTM (input projection hoisted, fully unrolled) --------
    gin = _mxu_dot(pooled, wih) + bl_ref[...]                 # (tb, 4H), t-major

    H = LSTM_H
    h = jnp.zeros((b_tile, H), jnp.float32)
    c = jnp.zeros((b_tile, H), jnp.float32)
    for t in range(T_POOL):                                   # static unroll (T_POOL = 6)
        gates = gin[t * b_tile:(t + 1) * b_tile, :] + _mxu_dot(h, whh)
        sig = jax.nn.sigmoid(gates[:, :3 * H])                # [i, f, o] in one pass
        g = jnp.tanh(gates[:, 3 * H:])
        i_g = sig[:, 0:H]
        f_g = sig[:, H:2 * H]
        o_g = sig[:, 2 * H:3 * H]
        c = f_g * c + i_g * g
        h = o_g * jnp.tanh(c)

    # ---- FC1 -> ReLU -> FC2 (-> sigmoid) -------------------------------------
    z = jnp.maximum(_mxu_dot(h, w1) + b1_ref[...], 0.0)       # (b_tile, FC1)
    out = _mxu_dot(z, w2) + b2_ref[...]                       # (b_tile, 1)
    if apply_sigmoid:
        out = jax.nn.sigmoid(out)
    o_ref[...] = out[None, :, :]


# --------------------------- wrapper (layout plumbing) ------------------------
def _build_patches(x_ncl, b_tile):
    """im2col, grouped by pool phase, rows (phase, t, b) per batch tile.

    Returns (num_tiles, POOL*T_POOL*b_tile, K*C) float32.  Pure XLA reshuffles;
    the kernel receives a lane-dense operand it can feed straight to the MXU.
    """
    n = x_ncl.shape[0]
    num_tiles = n // b_tile
    x_nlc = jnp.transpose(x_ncl, (0, 2, 1)).astype(jnp.float32)        # (N, L, C)
    # k-major / c-minor columns — matches w_conv.reshape(K*C, F).
    cols = jnp.concatenate([x_nlc[:, k:k + L_CONV, :] for k in range(CONV_K)],
                           axis=-1)                                     # (N, L_CONV, K*C)
    phases = []
    for p in range(POOL):                     # conv positions l = t*STRIDE + p
        ph = cols[:, p::STRIDE, :][:, :T_POOL, :]                       # (N, T_POOL, K*C)
        ph = ph.reshape(num_tiles, b_tile, T_POOL, KC)
        ph = jnp.transpose(ph, (0, 2, 1, 3))                            # t-major, b inner
        phases.append(ph.reshape(num_tiles, T_POOL * b_tile, KC))
    return jnp.concatenate(phases, axis=1)                              # (tiles, P*T*b, K*C)


def tf_hybrid_forward(x_ncl, params, apply_sigmoid=False, b_tile=None):
    """x_ncl: (N, C, L) float32, PyTorch Conv1d layout.  Returns (N, 1)."""
    n = x_ncl.shape[0]
    if b_tile is None:
        b_tile = n
    assert n % b_tile == 0
    num_tiles = n // b_tile
    rows = POOL * T_POOL * b_tile

    patches = _build_patches(x_ncl, b_tile)
    wc_flat = params["w_conv"].reshape(KC, CONV_FILTERS)
    # Gate columns permuted i,f,g,o -> i,f,o,g (kernel relies on this order).
    w_ih = _reorder_gates(params["w_ih"])
    w_hh = _reorder_gates(params["w_hh"])
    b_l = _reorder_gates(params["b_lstm"])

    const = lambda i: (0, 0)    # weights/biases: fetched once, VMEM-resident
    out = pl.pallas_call(
        functools.partial(tf_hybrid_kernel, b_tile=b_tile,
                          apply_sigmoid=apply_sigmoid),
        out_shape=jax.ShapeDtypeStruct((num_tiles, b_tile, 1), jnp.float32),
        grid=(num_tiles,),
        in_specs=[
            pl.BlockSpec((1, rows, KC), lambda i: (i, 0, 0)),            # patches
            pl.BlockSpec((KC, CONV_FILTERS), const),                     # conv W
            pl.BlockSpec((1, CONV_FILTERS), const),                      # conv b
            pl.BlockSpec((CONV_FILTERS, 4 * LSTM_H), const),             # W_ih
            pl.BlockSpec((LSTM_H, 4 * LSTM_H), const),                   # W_hh
            pl.BlockSpec((1, 4 * LSTM_H), const),                        # b_lstm
            pl.BlockSpec((LSTM_H, FC1), const),                          # W1
            pl.BlockSpec((1, FC1), const),                               # b1
            pl.BlockSpec((FC1, 1), const),                               # W2
            pl.BlockSpec((1, 1), const),                                 # b2
        ],
        out_specs=pl.BlockSpec((1, b_tile, 1), lambda i: (i, 0, 0)),
        # Blocked specs default to VMEM; constant index_maps keep the ~30 KB of
        # weights resident across batch-tile steps.  Parallel axis -> both v7x TCs.
        compiler_params=pltpu.CompilerParams(dimension_semantics=("parallel",)),
    )(patches, wc_flat, params["b_conv"], w_ih, w_hh, b_l,
      params["w1"], params["b1"], params["w2"], params["b2"])
    return out.reshape(n, 1)


# --------------------------- pure-JAX reference -------------------------------
def reference_forward(x_ncl, p, apply_sigmoid=False, mxu_precision=True):
    """Straightforward JAX implementation, original i,f,g,o gate order.

    mxu_precision=True uses the same bf16-operand / f32-accumulate dots as the
    kernel; False uses f32 Precision.HIGHEST (exact f32 semantics).
    """
    dot = _mxu_dot if mxu_precision else _hi_dot
    xl = jnp.transpose(x_ncl, (0, 2, 1)).astype(jnp.float32)            # (N, L, C)
    n = xl.shape[0]
    conv = jnp.zeros((n, L_CONV, CONV_FILTERS), jnp.float32)
    for k in range(CONV_K):
        xk = xl[:, k:k + L_CONV, :].reshape(n * L_CONV, CHANNELS)
        conv = conv + dot(xk, p["w_conv"][k]).reshape(n, L_CONV, CONV_FILTERS)
    conv = jnp.maximum(conv + p["b_conv"][None], 0.0)
    pooled = jnp.stack(
        [jnp.max(conv[:, t * STRIDE:t * STRIDE + POOL, :], axis=1)
         for t in range(T_POOL)], axis=1)                               # (N, T, F)
    H = LSTM_H
    h = jnp.zeros((n, H), jnp.float32)
    c = jnp.zeros((n, H), jnp.float32)
    for t in range(T_POOL):
        gates = dot(pooled[:, t, :], p["w_ih"]) + dot(h, p["w_hh"]) + p["b_lstm"]
        i = jax.nn.sigmoid(gates[:, 0:H])
        f = jax.nn.sigmoid(gates[:, H:2 * H])
        g = jnp.tanh(gates[:, 2 * H:3 * H])
        o = jax.nn.sigmoid(gates[:, 3 * H:4 * H])
        c = f * c + i * g
        h = o * jnp.tanh(c)
    z = jnp.maximum(dot(h, p["w1"]) + p["b1"], 0.0)
    out = dot(z, p["w2"]) + p["b2"]
    if apply_sigmoid:
        out = jax.nn.sigmoid(out)
    return out


# ------------------------------- params ---------------------------------------
def init_params(key):
    ks = jax.random.split(key, 9)
    return {
        # conv weight stored (K, C_in, F); bias (1, F)
        "w_conv": 0.1 * jax.random.normal(ks[0], (CONV_K, CHANNELS, CONV_FILTERS), jnp.float32),
        "b_conv": 0.1 * jax.random.normal(ks[1], (1, CONV_FILTERS), jnp.float32),
        # LSTM: (in, 4H), (H, 4H), combined bias (b_ih + b_hh) as (1, 4H); gate order i,f,g,o
        "w_ih": 0.1 * jax.random.normal(ks[2], (CONV_FILTERS, 4 * LSTM_H), jnp.float32),
        "w_hh": 0.1 * jax.random.normal(ks[3], (LSTM_H, 4 * LSTM_H), jnp.float32),
        "b_lstm": 0.1 * jax.random.normal(ks[4], (1, 4 * LSTM_H), jnp.float32),
        # FC heads stored (in, out)
        "w1": 0.1 * jax.random.normal(ks[5], (LSTM_H, FC1), jnp.float32),
        "b1": 0.1 * jax.random.normal(ks[6], (1, FC1), jnp.float32),
        "w2": 0.1 * jax.random.normal(ks[7], (FC1, 1), jnp.float32),
        "b2": 0.1 * jax.random.normal(ks[8], (1, 1), jnp.float32),
    }


# ------------------------------- main -----------------------------------------
if __name__ == "__main__":
    key = jax.random.PRNGKey(0)
    k_x, k_p = jax.random.split(key)
    x = jax.random.normal(k_x, (BATCH, CHANNELS, SEQ), jnp.float32)   # NCL like PyTorch
    params = init_params(k_p)

    out = tf_hybrid_forward(x, params, apply_sigmoid=True)
    out = jax.block_until_ready(out)
    assert out.shape == (BATCH, 1)
    assert bool(jnp.all(jnp.isfinite(out)))

    # Tight check vs a matched-precision (bf16-MXU) reference: validates layout,
    # im2col/pool-phase packing and the gate-column permutation.
    ref_mxu = reference_forward(x, params, apply_sigmoid=True, mxu_precision=True)
    assert bool(jnp.allclose(out, ref_mxu, rtol=1e-3, atol=1e-3)), (out, ref_mxu)

    # Loose check vs the exact f32 (Precision.HIGHEST) reference: bounds the
    # bf16-operand drift requested by the performance review.
    ref_f32 = reference_forward(x, params, apply_sigmoid=True, mxu_precision=False)
    assert bool(jnp.allclose(out, ref_f32, rtol=2e-2, atol=2e-2)), (out, ref_f32)

    print("KERNEL_OK")
</pallas_src>

<mosaic_0001>
module attributes {stable_mosaic.version = 11 : i64} {
  func.func @tf_hybrid_kernel(%arg0: i32, %arg1: memref<1x24x20xf32, #tpu.memory_space<vmem>>, %arg2: memref<20x32xf32, #tpu.memory_space<vmem>>, %arg3: memref<1x32xf32, #tpu.memory_space<vmem>>, %arg4: memref<32x128xf32, #tpu.memory_space<vmem>>, %arg5: memref<32x128xf32, #tpu.memory_space<vmem>>, %arg6: memref<1x128xf32, #tpu.memory_space<vmem>>, %arg7: memref<32x16xf32, #tpu.memory_space<vmem>>, %arg8: memref<1x16xf32, #tpu.memory_space<vmem>>, %arg9: memref<16x1xf32, #tpu.memory_space<vmem>>, %arg10: memref<1x1xf32, #tpu.memory_space<vmem>>, %arg11: memref<1x2x1xf32, #tpu.memory_space<vmem>>) attributes {dimension_semantics = [#tpu.dimension_semantics<parallel>], iteration_bounds = array<i64: 1>, scalar_prefetch = 0 : i64, scratch_operands = 0 : i64, tpu.core_type = #tpu.core_type<tc>, window_params = [{transform_indices = @transform_0, window_bounds = array<i64: 1, 24, 20>}, {pipeline_mode = #tpu.pipeline_mode<synchronous>, transform_indices = @transform_1, window_bounds = array<i64: 20, 32>}, {pipeline_mode = #tpu.pipeline_mode<synchronous>, transform_indices = @transform_2, window_bounds = array<i64: 1, 32>}, {pipeline_mode = #tpu.pipeline_mode<synchronous>, transform_indices = @transform_3, window_bounds = array<i64: 32, 128>}, {pipeline_mode = #tpu.pipeline_mode<synchronous>, transform_indices = @transform_4, window_bounds = array<i64: 32, 128>}, {pipeline_mode = #tpu.pipeline_mode<synchronous>, transform_indices = @transform_5, window_bounds = array<i64: 1, 128>}, {pipeline_mode = #tpu.pipeline_mode<synchronous>, transform_indices = @transform_6, window_bounds = array<i64: 32, 16>}, {pipeline_mode = #tpu.pipeline_mode<synchronous>, transform_indices = @transform_7, window_bounds = array<i64: 1, 16>}, {pipeline_mode = #tpu.pipeline_mode<synchronous>, transform_indices = @transform_8, window_bounds = array<i64: 16, 1>}, {pipeline_mode = #tpu.pipeline_mode<synchronous>, transform_indices = @transform_9, window_bounds = array<i64: 1, 1>}, {transform_indices = @transform_10, window_bounds = array<i64: 1, 2, 1>}]} {
    %c0 = arith.constant 0 : index
    %c0_0 = arith.constant 0 : index
    %c0_1 = arith.constant 0 : index
    %0 = vector.load %arg1[%c0, %c0_0, %c0_1] : memref<1x24x20xf32, #tpu.memory_space<vmem>>, vector<1x24x20xf32>
    %1 = vector.shape_cast %0 : vector<1x24x20xf32> to vector<24x20xf32>
    %c0_2 = arith.constant 0 : index
    %c0_3 = arith.constant 0 : index
    %2 = vector.load %arg2[%c0_2, %c0_3] : memref<20x32xf32, #tpu.memory_space<vmem>>, vector<20x32xf32>
    %3 = arith.truncf %2 : vector<20x32xf32> to vector<20x32xbf16>
    %c0_4 = arith.constant 0 : index
    %c0_5 = arith.constant 0 : index
    %4 = vector.load %arg4[%c0_4, %c0_5] : memref<32x128xf32, #tpu.memory_space<vmem>>, vector<32x128xf32>
    %5 = arith.truncf %4 : vector<32x128xf32> to vector<32x128xbf16>
    %c0_6 = arith.constant 0 : index
    %c0_7 = arith.constant 0 : index
    %6 = vector.load %arg5[%c0_6, %c0_7] : memref<32x128xf32, #tpu.memory_space<vmem>>, vector<32x128xf32>
    %7 = arith.truncf %6 : vector<32x128xf32> to vector<32x128xbf16>
    %c0_8 = arith.constant 0 : index
    %c0_9 = arith.constant 0 : index
    %8 = vector.load %arg7[%c0_8, %c0_9] : memref<32x16xf32, #tpu.memory_space<vmem>>, vector<32x16xf32>
    %9 = arith.truncf %8 : vector<32x16xf32> to vector<32x16xbf16>
    %c0_10 = arith.constant 0 : index
    %c0_11 = arith.constant 0 : index
    %10 = vector.load %arg9[%c0_10, %c0_11] : memref<16x1xf32, #tpu.memory_space<vmem>>, vector<16x1xf32>
    %11 = arith.truncf %10 : vector<16x1xf32> to vector<16x1xbf16>
    %12 = arith.truncf %1 : vector<24x20xf32> to vector<24x20xbf16>
    %cst = arith.constant dense<0.000000e+00> : vector<24x32xf32>
    %13 = tpu.matmul %12, %3, %cst {dimension_numbers = #tpu.dot_dimension_numbers<[1], [0], [0], [1], [0, 0, 1, 1], [], []>} : vector<24x20xbf16>, vector<20x32xbf16>, vector<24x32xf32> -> vector<24x32xf32>
    %c0_12 = arith.constant 0 : index
    %c0_13 = arith.constant 0 : index
    %14 = vector.load %arg3[%c0_12, %c0_13] : memref<1x32xf32, #tpu.memory_space<vmem>>, vector<1x32xf32>
    %15 = vector.broadcast %14 : vector<1x32xf32> to vector<24x32xf32>
    %16 = arith.addf %13, %15 : vector<24x32xf32>
    %cst_14 = arith.constant 0.000000e+00 : f32
    %17 = vector.broadcast %cst_14 : f32 to vector<24x32xf32>
    %18 = arith.maximumf %16, %17 : vector<24x32xf32>
    %19 = vector.extract_strided_slice %18 {offsets = [0, 0], sizes = [12, 32], strides = [1, 1]} : vector<24x32xf32> to vector<12x32xf32>
    %20 = vector.extract_strided_slice %18 {offsets = [12, 0], sizes = [12, 32], strides = [1, 1]} : vector<24x32xf32> to vector<12x32xf32>
    %21 = arith.maximumf %19, %20 : vector<12x32xf32>
    %22 = arith.truncf %21 : vector<12x32xf32> to vector<12x32xbf16>
    %cst_15 = arith.constant dense<0.000000e+00> : vector<12x128xf32>
    %23 = tpu.matmul %22, %5, %cst_15 {dimension_numbers = #tpu.dot_dimension_numbers<[1], [0], [0], [1], [0, 0, 1, 1], [], []>} : vector<12x32xbf16>, vector<32x128xbf16>, vector<12x128xf32> -> vector<12x128xf32>
    %c0_16 = arith.constant 0 : index
    %c0_17 = arith.constant 0 : index
    %24 = vector.load %arg6[%c0_16, %c0_17] : memref<1x128xf32, #tpu.memory_space<vmem>>, vector<1x128xf32>
    %25 = vector.broadcast %24 : vector<1x128xf32> to vector<12x128xf32>
    %26 = arith.addf %23, %25 : vector<12x128xf32>
    %cst_18 = arith.constant 0.000000e+00 : f32
    %27 = vector.broadcast %cst_18 : f32 to vector<2x32xf32>
    %cst_19 = arith.constant 0.000000e+00 : f32
    %28 = vector.broadcast %cst_19 : f32 to vector<2x32xf32>
    %29 = vector.extract_strided_slice %26 {offsets = [0, 0], sizes = [2, 128], strides = [1, 1]} : vector<12x128xf32> to vector<2x128xf32>
    %30 = arith.truncf %27 : vector<2x32xf32> to vector<2x32xbf16>
    %cst_20 = arith.constant dense<0.000000e+00> : vector<2x128xf32>
    %31 = tpu.matmul %30, %7, %cst_20 {dimension_numbers = #tpu.dot_dimension_numbers<[1], [0], [0], [1], [0, 0, 1, 1], [], []>} : vector<2x32xbf16>, vector<32x128xbf16>, vector<2x128xf32> -> vector<2x128xf32>
    %32 = arith.addf %29, %31 : vector<2x128xf32>
    %33 = vector.extract_strided_slice %32 {offsets = [0, 0], sizes = [2, 96], strides = [1, 1]} : vector<2x128xf32> to vector<2x96xf32>
    %34 = arith.negf %33 : vector<2x96xf32>
    %35 = math.exp %34 : vector<2x96xf32>
    %cst_21 = arith.constant 1.000000e+00 : f32
    %36 = vector.broadcast %cst_21 : f32 to vector<2x96xf32>
    %37 = arith.addf %36, %35 : vector<2x96xf32>
    %38 = arith.divf %36, %37 : vector<2x96xf32>
    %39 = vector.extract_strided_slice %32 {offsets = [0, 96], sizes = [2, 32], strides = [1, 1]} : vector<2x128xf32> to vector<2x32xf32>
    %40 = math.tanh %39 : vector<2x32xf32>
    %41 = vector.extract_strided_slice %38 {offsets = [0, 0], sizes = [2, 32], strides = [1, 1]} : vector<2x96xf32> to vector<2x32xf32>
    %42 = vector.extract_strided_slice %38 {offsets = [0, 32], sizes = [2, 32], strides = [1, 1]} : vector<2x96xf32> to vector<2x32xf32>
    %43 = vector.extract_strided_slice %38 {offsets = [0, 64], sizes = [2, 32], strides = [1, 1]} : vector<2x96xf32> to vector<2x32xf32>
    %44 = arith.mulf %42, %28 : vector<2x32xf32>
    %45 = arith.mulf %41, %40 : vector<2x32xf32>
    %46 = arith.addf %44, %45 : vector<2x32xf32>
    %47 = math.tanh %46 : vector<2x32xf32>
    %48 = arith.mulf %43, %47 : vector<2x32xf32>
    %49 = vector.extract_strided_slice %26 {offsets = [2, 0], sizes = [2, 128], strides = [1, 1]} : vector<12x128xf32> to vector<2x128xf32>
    %50 = arith.truncf %48 : vector<2x32xf32> to vector<2x32xbf16>
    %cst_22 = arith.constant dense<0.000000e+00> : vector<2x128xf32>
    %51 = tpu.matmul %50, %7, %cst_22 {dimension_numbers = #tpu.dot_dimension_numbers<[1], [0], [0], [1], [0, 0, 1, 1], [], []>} : vector<2x32xbf16>, vector<32x128xbf16>, vector<2x128xf32> -> vector<2x128xf32>
    %52 = arith.addf %49, %51 : vector<2x128xf32>
    %53 = vector.extract_strided_slice %52 {offsets = [0, 0], sizes = [2, 96], strides = [1, 1]} : vector<2x128xf32> to vector<2x96xf32>
    %54 = arith.negf %53 : vector<2x96xf32>
    %55 = math.exp %54 : vector<2x96xf32>
    %cst_23 = arith.constant 1.000000e+00 : f32
    %56 = vector.broadcast %cst_23 : f32 to vector<2x96xf32>
    %57 = arith.addf %56, %55 : vector<2x96xf32>
    %58 = arith.divf %56, %57 : vector<2x96xf32>
    %59 = vector.extract_strided_slice %52 {offsets = [0, 96], sizes = [2, 32], strides = [1, 1]} : vector<2x128xf32> to vector<2x32xf32>
    %60 = math.tanh %59 : vector<2x32xf32>
    %61 = vector.extract_strided_slice %58 {offsets = [0, 0], sizes = [2, 32], strides = [1, 1]} : vector<2x96xf32> to vector<2x32xf32>
    %62 = vector.extract_strided_slice %58 {offsets = [0, 32], sizes = [2, 32], strides = [1, 1]} : vector<2x96xf32> to vector<2x32xf32>
    %63 = vector.extract_strided_slice %58 {offsets = [0, 64], sizes = [2, 32], strides = [1, 1]} : vector<2x96xf32> to vector<2x32xf32>
    %64 = arith.mulf %62, %46 : vector<2x32xf32>
    %65 = arith.mulf %61, %60 : vector<2x32xf32>
    %66 = arith.addf %64, %65 : vector<2x32xf32>
    %67 = math.tanh %66 : vector<2x32xf32>
    %68 = arith.mulf %63, %67 : vector<2x32xf32>
    %69 = vector.extract_strided_slice %26 {offsets = [4, 0], sizes = [2, 128], strides = [1, 1]} : vector<12x128xf32> to vector<2x128xf32>
    %70 = arith.truncf %68 : vector<2x32xf32> to vector<2x32xbf16>
    %cst_24 = arith.constant dense<0.000000e+00> : vector<2x128xf32>
    %71 = tpu.matmul %70, %7, %cst_24 {dimension_numbers = #tpu.dot_dimension_numbers<[1], [0], [0], [1], [0, 0, 1, 1], [], []>} : vector<2x32xbf16>, vector<32x128xbf16>, vector<2x128xf32> -> vector<2x128xf32>
    %72 = arith.addf %69, %71 : vector<2x128xf32>
    %73 = vector.extract_strided_slice %72 {offsets = [0, 0], sizes = [2, 96], strides = [1, 1]} : vector<2x128xf32> to vector<2x96xf32>
    %74 = arith.negf %73 : vector<2x96xf32>
    %75 = math.exp %74 : vector<2x96xf32>
    %cst_25 = arith.constant 1.000000e+00 : f32
    %76 = vector.broadcast %cst_25 : f32 to vector<2x96xf32>
    %77 = arith.addf %76, %75 : vector<2x96xf32>
    %78 = arith.divf %76, %77 : vector<2x96xf32>
    %79 = vector.extract_strided_slice %72 {offsets = [0, 96], sizes = [2, 32], strides = [1, 1]} : vector<2x128xf32> to vector<2x32xf32>
    %80 = math.tanh %79 : vector<2x32xf32>
    %81 = vector.extract_strided_slice %78 {offsets = [0, 0], sizes = [2, 32], strides = [1, 1]} : vector<2x96xf32> to vector<2x32xf32>
    %82 = vector.extract_strided_slice %78 {offsets = [0, 32], sizes = [2, 32], strides = [1, 1]} : vector<2x96xf32> to vector<2x32xf32>
    %83 = vector.extract_strided_slice %78 {offsets = [0, 64], sizes = [2, 32], strides = [1, 1]} : vector<2x96xf32> to vector<2x32xf32>
    %84 = arith.mulf %82, %66 : vector<2x32xf32>
    %85 = arith.mulf %81, %80 : vector<2x32xf32>
    %86 = arith.addf %84, %85 : vector<2x32xf32>
    %87 = math.tanh %86 : vector<2x32xf32>
    %88 = arith.mulf %83, %87 : vector<2x32xf32>
    %89 = vector.extract_strided_slice %26 {offsets = [6, 0], sizes = [2, 128], strides = [1, 1]} : vector<12x128xf32> to vector<2x128xf32>
    %90 = arith.truncf %88 : vector<2x32xf32> to vector<2x32xbf16>
    %cst_26 = arith.constant dense<0.000000e+00> : vector<2x128xf32>
    %91 = tpu.matmul %90, %7, %cst_26 {dimension_numbers = #tpu.dot_dimension_numbers<[1], [0], [0], [1], [0, 0, 1, 1], [], []>} : vector<2x32xbf16>, vector<32x128xbf16>, vector<2x128xf32> -> vector<2x128xf32>
    %92 = arith.addf %89, %91 : vector<2x128xf32>
    %93 = vector.extract_strided_slice %92 {offsets = [0, 0], sizes = [2, 96], strides = [1, 1]} : vector<2x128xf32> to vector<2x96xf32>
    %94 = arith.negf %93 : vector<2x96xf32>
    %95 = math.exp %94 : vector<2x96xf32>
    %cst_27 = arith.constant 1.000000e+00 : f32
    %96 = vector.broadcast %cst_27 : f32 to vector<2x96xf32>
    %97 = arith.addf %96, %95 : vector<2x96xf32>
    %98 = arith.divf %96, %97 : vector<2x96xf32>
    %99 = vector.extract_strided_slice %92 {offsets = [0, 96], sizes = [2, 32], strides = [1, 1]} : vector<2x128xf32> to vector<2x32xf32>
    %100 = math.tanh %99 : vector<2x32xf32>
    %101 = vector.extract_strided_slice %98 {offsets = [0, 0], sizes = [2, 32], strides = [1, 1]} : vector<2x96xf32> to vector<2x32xf32>
    %102 = vector.extract_strided_slice %98 {offsets = [0, 32], sizes = [2, 32], strides = [1, 1]} : vector<2x96xf32> to vector<2x32xf32>
    %103 = vector.extract_strided_slice %98 {offsets = [0, 64], sizes = [2, 32], strides = [1, 1]} : vector<2x96xf32> to vector<2x32xf32>
    %104 = arith.mulf %102, %86 : vector<2x32xf32>
    %105 = arith.mulf %101, %100 : vector<2x32xf32>
    %106 = arith.addf %104, %105 : vector<2x32xf32>
    %107 = math.tanh %106 : vector<2x32xf32>
    %108 = arith.mulf %103, %107 : vector<2x32xf32>
    %109 = vector.extract_strided_slice %26 {offsets = [8, 0], sizes = [2, 128], strides = [1, 1]} : vector<12x128xf32> to vector<2x128xf32>
    %110 = arith.truncf %108 : vector<2x32xf32> to vector<2x32xbf16>
    %cst_28 = arith.constant dense<0.000000e+00> : vector<2x128xf32>
    %111 = tpu.matmul %110, %7, %cst_28 {dimension_numbers = #tpu.dot_dimension_numbers<[1], [0], [0], [1], [0, 0, 1, 1], [], []>} : vector<2x32xbf16>, vector<32x128xbf16>, vector<2x128xf32> -> vector<2x128xf32>
    %112 = arith.addf %109, %111 : vector<2x128xf32>
    %113 = vector.extract_strided_slice %112 {offsets = [0, 0], sizes = [2, 96], strides = [1, 1]} : vector<2x128xf32> to vector<2x96xf32>
    %114 = arith.negf %113 : vector<2x96xf32>
    %115 = math.exp %114 : vector<2x96xf32>
    %cst_29 = arith.constant 1.000000e+00 : f32
    %116 = vector.broadcast %cst_29 : f32 to vector<2x96xf32>
    %117 = arith.addf %116, %115 : vector<2x96xf32>
    %118 = arith.divf %116, %117 : vector<2x96xf32>
    %119 = vector.extract_strided_slice %112 {offsets = [0, 96], sizes = [2, 32], strides = [1, 1]} : vector<2x128xf32> to vector<2x32xf32>
    %120 = math.tanh %119 : vector<2x32xf32>
    %121 = vector.extract_strided_slice %118 {offsets = [0, 0], sizes = [2, 32], strides = [1, 1]} : vector<2x96xf32> to vector<2x32xf32>
    %122 = vector.extract_strided_slice %118 {offsets = [0, 32], sizes = [2, 32], strides = [1, 1]} : vector<2x96xf32> to vector<2x32xf32>
    %123 = vector.extract_strided_slice %118 {offsets = [0, 64], sizes = [2, 32], strides = [1, 1]} : vector<2x96xf32> to vector<2x32xf32>
    %124 = arith.mulf %122, %106 : vector<2x32xf32>
    %125 = arith.mulf %121, %120 : vector<2x32xf32>
    %126 = arith.addf %124, %125 : vector<2x32xf32>
    %127 = math.tanh %126 : vector<2x32xf32>
    %128 = arith.mulf %123, %127 : vector<2x32xf32>
    %129 = vector.extract_strided_slice %26 {offsets = [10, 0], sizes = [2, 128], strides = [1, 1]} : vector<12x128xf32> to vector<2x128xf32>
    %130 = arith.truncf %128 : vector<2x32xf32> to vector<2x32xbf16>
    %cst_30 = arith.constant dense<0.000000e+00> : vector<2x128xf32>
    %131 = tpu.matmul %130, %7, %cst_30 {dimension_numbers = #tpu.dot_dimension_numbers<[1], [0], [0], [1], [0, 0, 1, 1], [], []>} : vector<2x32xbf16>, vector<32x128xbf16>, vector<2x128xf32> -> vector<2x128xf32>
    %132 = arith.addf %129, %131 : vector<2x128xf32>
    %133 = vector.extract_strided_slice %132 {offsets = [0, 0], sizes = [2, 96], strides = [1, 1]} : vector<2x128xf32> to vector<2x96xf32>
    %134 = arith.negf %133 : vector<2x96xf32>
    %135 = math.exp %134 : vector<2x96xf32>
    %cst_31 = arith.constant 1.000000e+00 : f32
    %136 = vector.broadcast %cst_31 : f32 to vector<2x96xf32>
    %137 = arith.addf %136, %135 : vector<2x96xf32>
    %138 = arith.divf %136, %137 : vector<2x96xf32>
    %139 = vector.extract_strided_slice %132 {offsets = [0, 96], sizes = [2, 32], strides = [1, 1]} : vector<2x128xf32> to vector<2x32xf32>
    %140 = math.tanh %139 : vector<2x32xf32>
    %141 = vector.extract_strided_slice %138 {offsets = [0, 0], sizes = [2, 32], strides = [1, 1]} : vector<2x96xf32> to vector<2x32xf32>
    %142 = vector.extract_strided_slice %138 {offsets = [0, 32], sizes = [2, 32], strides = [1, 1]} : vector<2x96xf32> to vector<2x32xf32>
    %143 = vector.extract_strided_slice %138 {offsets = [0, 64], sizes = [2, 32], strides = [1, 1]} : vector<2x96xf32> to vector<2x32xf32>
    %144 = arith.mulf %142, %126 : vector<2x32xf32>
    %145 = arith.mulf %141, %140 : vector<2x32xf32>
    %146 = arith.addf %144, %145 : vector<2x32xf32>
    %147 = math.tanh %146 : vector<2x32xf32>
    %148 = arith.mulf %143, %147 : vector<2x32xf32>
    %149 = arith.truncf %148 : vector<2x32xf32> to vector<2x32xbf16>
    %cst_32 = arith.constant dense<0.000000e+00> : vector<2x16xf32>
    %150 = tpu.matmul %149, %9, %cst_32 {dimension_numbers = #tpu.dot_dimension_numbers<[1], [0], [0], [1], [0, 0, 1, 1], [], []>} : vector<2x32xbf16>, vector<32x16xbf16>, vector<2x16xf32> -> vector<2x16xf32>
    %c0_33 = arith.constant 0 : index
    %c0_34 = arith.constant 0 : index
    %151 = vector.load %arg8[%c0_33, %c0_34] : memref<1x16xf32, #tpu.memory_space<vmem>>, vector<1x16xf32>
    %152 = vector.broadcast %151 : vector<1x16xf32> to vector<2x16xf32>
    %153 = arith.addf %150, %152 : vector<2x16xf32>
    %cst_35 = arith.constant 0.000000e+00 : f32
    %154 = vector.broadcast %cst_35 : f32 to vector<2x16xf32>
    %155 = arith.maximumf %153, %154 : vector<2x16xf32>
    %156 = arith.truncf %155 : vector<2x16xf32> to vector<2x16xbf16>
    %cst_36 = arith.constant dense<0.000000e+00> : vector<2x1xf32>
    %157 = tpu.matmul %156, %11, %cst_36 {dimension_numbers = #tpu.dot_dimension_numbers<[1], [0], [0], [1], [0, 0, 1, 1], [], []>} : vector<2x16xbf16>, vector<16x1xbf16>, vector<2x1xf32> -> vector<2x1xf32>
    %c0_37 = arith.constant 0 : index
    %c0_38 = arith.constant 0 : index
    %158 = vector.load %arg10[%c0_37, %c0_38] : memref<1x1xf32, #tpu.memory_space<vmem>>, vector<1x1xf32>
    %159 = vector.broadcast %158 : vector<1x1xf32> to vector<2x1xf32>
    %160 = arith.addf %157, %159 : vector<2x1xf32>
    %161 = arith.negf %160 : vector<2x1xf32>
    %162 = math.exp %161 : vector<2x1xf32>
    %cst_39 = arith.constant 1.000000e+00 : f32
    %163 = vector.broadcast %cst_39 : f32 to vector<2x1xf32>
    %164 = arith.addf %163, %162 : vector<2x1xf32>
    %165 = arith.divf %163, %164 : vector<2x1xf32>
    %166 = vector.shape_cast %165 : vector<2x1xf32> to vector<1x2x1xf32>
    %c0_40 = arith.constant 0 : index
    %c0_41 = arith.constant 0 : index
    %c0_42 = arith.constant 0 : index
    %167 = vector.load %arg11[%c0_40, %c0_41, %c0_42] : memref<1x2x1xf32, #tpu.memory_space<vmem>>, vector<1x2x1xf32>
    tpu.vector_store %arg11[%c0_40, %c0_41, %c0_42], %166 {strides = array<i32>} : memref<1x2x1xf32, #tpu.memory_space<vmem>>, vector<1x2x1xf32>,
    return
  }
  func.func @transform_0(%arg0: i32) -> (i32, i32, i32) {
    %c0_i32 = arith.constant 0 : i32
    %c0_i32_0 = arith.constant 0 : i32
    %c0_i32_1 = arith.constant 0 : i32
    return %arg0, %c0_i32, %c0_i32_0 : i32, i32, i32
  }
  func.func @transform_1(%arg0: i32) -> (i32, i32) {
    %c0_i32 = arith.constant 0 : i32
    %c0_i32_0 = arith.constant 0 : i32
    %c0_i32_1 = arith.constant 0 : i32
    return %c0_i32, %c0_i32_0 : i32, i32
  }
  func.func @transform_2(%arg0: i32) -> (i32, i32) {
    %c0_i32 = arith.constant 0 : i32
    %c0_i32_0 = arith.constant 0 : i32
    %c0_i32_1 = arith.constant 0 : i32
    return %c0_i32, %c0_i32_0 : i32, i32
  }
  func.func @transform_3(%arg0: i32) -> (i32, i32) {
    %c0_i32 = arith.constant 0 : i32
    %c0_i32_0 = arith.constant 0 : i32
    %c0_i32_1 = arith.constant 0 : i32
    return %c0_i32, %c0_i32_0 : i32, i32
  }
  func.func @transform_4(%arg0: i32) -> (i32, i32) {
    %c0_i32 = arith.constant 0 : i32
    %c0_i32_0 = arith.constant 0 : i32
    %c0_i32_1 = arith.constant 0 : i32
    return %c0_i32, %c0_i32_0 : i32, i32
  }
  func.func @transform_5(%arg0: i32) -> (i32, i32) {
    %c0_i32 = arith.constant 0 : i32
    %c0_i32_0 = arith.constant 0 : i32
    %c0_i32_1 = arith.constant 0 : i32
    return %c0_i32, %c0_i32_0 : i32, i32
  }
  func.func @transform_6(%arg0: i32) -> (i32, i32) {
    %c0_i32 = arith.constant 0 : i32
    %c0_i32_0 = arith.constant 0 : i32
    %c0_i32_1 = arith.constant 0 : i32
    return %c0_i32, %c0_i32_0 : i32, i32
  }
  func.func @transform_7(%arg0: i32) -> (i32, i32) {
    %c0_i32 = arith.constant 0 : i32
    %c0_i32_0 = arith.constant 0 : i32
    %c0_i32_1 = arith.constant 0 : i32
    return %c0_i32, %c0_i32_0 : i32, i32
  }
  func.func @transform_8(%arg0: i32) -> (i32, i32) {
    %c0_i32 = arith.constant 0 : i32
    %c0_i32_0 = arith.constant 0 : i32
    %c0_i32_1 = arith.constant 0 : i32
    return %c0_i32, %c0_i32_0 : i32, i32
  }
  func.func @transform_9(%arg0: i32) -> (i32, i32) {
    %c0_i32 = arith.constant 0 : i32
    %c0_i32_0 = arith.constant 0 : i32
    %c0_i32_1 = arith.constant 0 : i32
    return %c0_i32, %c0_i32_0 : i32, i32
  }
  func.func @transform_10(%arg0: i32) -> (i32, i32, i32) {
    %c0_i32 = arith.constant 0 : i32
    %c0_i32_0 = arith.constant 0 : i32
    %c0_i32_1 = arith.constant 0 : i32
    return %arg0, %c0_i32, %c0_i32_0 : i32, i32, i32
  }
}

</mosaic_0001>

<llo_original>
// kernel: tpu_custom_call.1
$region0: #{tpu_custom_call.1}
  #allocation0 [shape = 'u32[]', space=smem, size = 0x4, offset = 0x4, fixed_abs, tag = 'smem constant byte address 0x4 - core index']
  #allocation1 [shape = 'u32[144,128]{1,0:T(1,128)}', space=vmem, size = 0x12000, scoped, tag = 'internal scratch']
  #allocation2 [shape = 'f32[1,1]{1,0:T(1,128)S(1)}', space=vmem, size = 0x200, scoped, tag = 'scoped memory for tpu_custom_call.1']
  %s0 = inlined_call_operand.vmem [shape: f32[1,24,20], index: 0, kind: input, shape index: {}]
  %s1 = inlined_call_operand.vmem [shape: f32[20,32], index: 1, kind: input, shape index: {}]
  %s2 = inlined_call_operand.vmem [shape: f32[1,32], index: 2, kind: input, shape index: {}]
  %s3 = inlined_call_operand.vmem [shape: f32[32,128], index: 3, kind: input, shape index: {}]
  %s4 = inlined_call_operand.vmem [shape: f32[32,128], index: 4, kind: input, shape index: {}]
  %s5 = inlined_call_operand.vmem [shape: f32[1,128], index: 5, kind: input, shape index: {}]
  %s6 = inlined_call_operand.vmem [shape: f32[32,16], index: 6, kind: input, shape index: {}]
  %s7 = inlined_call_operand.vmem [shape: f32[1,16], index: 7, kind: input, shape index: {}]
  %s8 = inlined_call_operand.vmem [shape: f32[16,1], index: 8, kind: input, shape index: {}]
  %s9 = inlined_call_operand.<no memory space> [shape: f32[1,1], index: 9, kind: input, shape index: {}]
  %s10 = inlined_call_operand.vmem [shape: f32[1,2,1], index: 10, kind: output, shape index: {}]
  %s11 = sld [smem:[#allocation0]]
  $region50: #{tpu_custom_call.1} parent=0
    _
  %s13 = ssub.s32 1, %s11
  %s14 = scalar_select 0, %s13, %s11
  %v15 = vstv %s9
  %16 = vst [vmem:[#allocation2] sm:$0x1] %v15
  // Predicated region
  $region2: #{tpu_custom_call.1} parent=0 // pred_check
    _
  $region3: #{tpu_custom_call.1} parent=0 // pred_check_branch
    %18 = sbr.rel (0) target = $region5
  $region4: #{tpu_custom_call.1} parent=0 // pred_region
    _
  $region5: #{tpu_custom_call.1} parent=0 // pred_fallthru
    _
  // Predicated region
  $region6: #{tpu_custom_call.1} parent=0 // pred_check
    _
  $region7: #{tpu_custom_call.1} parent=0 // pred_check_branch
    %20 = sbr.rel (0) target = $region9
  $region8: #{tpu_custom_call.1} parent=0 // pred_region
    _
  $region9: #{tpu_custom_call.1} parent=0 // pred_fallthru
    _
  // Predicated region
  $region10: #{tpu_custom_call.1} parent=0 // pred_check
    _
  $region11: #{tpu_custom_call.1} parent=0 // pred_check_branch
    %22 = sbr.rel (0) target = $region13
  $region12: #{tpu_custom_call.1} parent=0 // pred_region
    _
  $region13: #{tpu_custom_call.1} parent=0 // pred_fallthru
    _
  // Predicated region
  $region14: #{tpu_custom_call.1} parent=0 // pred_check
    _
  $region15: #{tpu_custom_call.1} parent=0 // pred_check_branch
    %24 = sbr.rel (0) target = $region17
  $region16: #{tpu_custom_call.1} parent=0 // pred_region
    _
  $region17: #{tpu_custom_call.1} parent=0 // pred_fallthru
    _
  // Predicated region
  $region18: #{tpu_custom_call.1} parent=0 // pred_check
    _
  $region19: #{tpu_custom_call.1} parent=0 // pred_check_branch
    %26 = sbr.rel (0) target = $region21
  $region20: #{tpu_custom_call.1} parent=0 // pred_region
    _
  $region21: #{tpu_custom_call.1} parent=0 // pred_fallthru
    _
  // Predicated region
  $region22: #{tpu_custom_call.1} parent=0 // pred_check
    _
  $region23: #{tpu_custom_call.1} parent=0 // pred_check_branch
    %28 = sbr.rel (0) target = $region25
  $region24: #{tpu_custom_call.1} parent=0 // pred_region
    _
  $region25: #{tpu_custom_call.1} parent=0 // pred_fallthru
    _
  // Predicated region
  $region26: #{tpu_custom_call.1} parent=0 // pred_check
    _
  $region27: #{tpu_custom_call.1} parent=0 // pred_check_branch
    %30 = sbr.rel (0) target = $region29
  $region28: #{tpu_custom_call.1} parent=0 // pred_region
    _
  $region29: #{tpu_custom_call.1} parent=0 // pred_fallthru
    _
  // Predicated region
  $region30: #{tpu_custom_call.1} parent=0 // pred_check
    _
  $region31: #{tpu_custom_call.1} parent=0 // pred_check_branch
    %32 = sbr.rel (0) target = $region33
  $region32: #{tpu_custom_call.1} parent=0 // pred_region
    _
  $region33: #{tpu_custom_call.1} parent=0 // pred_fallthru
    _
  // Predicated region
  $region34: #{tpu_custom_call.1} parent=0 // pred_check
    _
  $region35: #{tpu_custom_call.1} parent=0 // pred_check_branch
    %34 = sbr.rel (0) target = $region37
  $region36: #{tpu_custom_call.1} parent=0 // pred_region
    _
  $region37: #{tpu_custom_call.1} parent=0 // pred_fallthru
    _
  // Predicated region
  $region38: #{tpu_custom_call.1} parent=0 // pred_check
    _
  $region39: #{tpu_custom_call.1} parent=0 // pred_check_branch
    %36 = sbr.rel (0) target = $region41
  $region40: #{tpu_custom_call.1} parent=0 // pred_region
    _
  $region41: #{tpu_custom_call.1} parent=0 // pred_fallthru
    _
  %v38 = vld [vmem:[%s0] sm:$0xff]
  %v39 = vld [vmem:[%s0 + $0x8] sm:$0xff]
  %v40 = vld [vmem:[%s0 + $0x10] sm:$0xff]
  %v41 = vld [vmem:[%s1] sm:$0xff]
  %v42 = vld [vmem:[%s1 + $0x8] sm:$0xff]
  %v43 = vld [vmem:[%s1 + $0x10] sm:$0xf]
  %v44 = vpack.c.bf16 %v42, %v41
  %v45 = vpack.c.bf16 %v43, %v43
  %v46 = vld [vmem:[%s3] sm:$0xff]
  %v47 = vld [vmem:[%s3 + $0x8] sm:$0xff]
  %v48 = vld [vmem:[%s3 + $0x10] sm:$0xff]
  %v49 = vld [vmem:[%s3 + $0x18] sm:$0xff]
  %v50 = vpack.c.bf16 %v47, %v46
  %v51 = vpack.c.bf16 %v49, %v48
  %v52 = vld [vmem:[%s4] sm:$0xff]
  %v53 = vld [vmem:[%s4 + $0x8] sm:$0xff]
  %v54 = vld [vmem:[%s4 + $0x10] sm:$0xff]
  %v55 = vld [vmem:[%s4 + $0x18] sm:$0xff]
  %v56 = vpack.c.bf16 %v53, %v52
  %v57 = vpack.c.bf16 %v55, %v54
  %v58 = vld [vmem:[%s6] sm:$0xff]
  %v59 = vld [vmem:[%s6 + $0x8] sm:$0xff]
  %v60 = vld [vmem:[%s6 + $0x10] sm:$0xff]
  %v61 = vld [vmem:[%s6 + $0x18] sm:$0xff]
  %v62 = vpack.c.bf16 %v59, %v58
  %v63 = vpack.c.bf16 %v61, %v60
  %v64 = vld [vmem:[%s8] sm:$0xff]
  %v65 = vld [vmem:[%s8 + $0x8] sm:$0xff]
  %v66 = vpack.c.bf16 %v65, %v64
  %v67 = vpack.c.bf16 %v39, %v38
  %v68 = vpack.c.bf16 %v40, %v40
  %v69 = vld [vmem:[%s2] sm:$0x1]
  %v71 = vlaneseq
  %v72 = vshrl.u32 %v71, 7
  %v73 = vsub.s32 0, %v72
  %v74 = vrot.slane %v69, %v73
  %vm76 = vcmask 162816
  %v78 = vsel %vm76, %v67, 0
  %v81 = vsel %vm76, %v68, 0
  %vm83 = vcmask 1041408
  %v85 = vsel %vm83, %v45, 0
  %87 = vmatprep.subr.bf16.mxu0 0
  %88 = vmatpush1.bf16.msra.mxu0 %v44
  %89 = vmatprep.subr.bf16.mxu0 0
  %90 = vmatpush1.bf16.msra.mxu0 %v85
  %91 = vmatprep.subr.bf16.mxu0 0
  %92 = vmatpush1.bf16.msra.mxu0 0
  %93 = vmatprep.subr.bf16.mxu0 0
  %94 = vmatpush1.bf16.msra.mxu0 0
  %95 = vmatprep.subr.bf16.mxu0 0
  %96 = vmatpush1.bf16.msra.mxu0 0
  %97 = vmatprep.subr.bf16.mxu0 0
  %98 = vmatpush1.bf16.msra.mxu0 0
  %99 = vmatprep.subr.bf16.mxu0 0
  %100 = vmatpush1.bf16.msra.mxu0 0
  %101 = vmatprep.subr.bf16.mxu0 0
  %102 = vmatpush1.bf16.msra.mxu0 0
  %103 = vmatprep.subr.bf16.mxu0 0
  %104 = vmatpush1.bf16.msra.mxu0 0
  %105 = vmatprep.subr.bf16.mxu0 0
  %106 = vmatpush1.bf16.msra.mxu0 0
  %107 = vmatprep.subr.bf16.mxu0 0
  %108 = vmatpush1.bf16.msra.mxu0 0
  %109 = vmatprep.subr.bf16.mxu0 0
  %110 = vmatpush1.bf16.msra.mxu0 0
  %111 = vmatprep.subr.bf16.mxu0 0
  %112 = vmatpush1.bf16.msra.mxu0 0
  %113 = vmatprep.subr.bf16.mxu0 0
  %114 = vmatpush1.bf16.msra.mxu0 0
  %115 = vmatprep.subr.bf16.mxu0 0
  %116 = vmatpush1.bf16.msra.mxu0 0
  %117 = vmatprep.subr.bf16.mxu0 0
  %118 = vmatpush1.bf16.msra.mxu0 0
  %119 = vmatprep.mubr.bf16.mxu0 0
  %120 = vmatmul.mubr.bf16.gmra.mrb[0].mxu0 %v78
  %v121 = vpop.f32.mrb[0].mxu0
  %v122 = vadd.f32 %v74, %v121
  %v123 = vpop.f32.mrb[0].mxu0
  %v124 = vpop.f32.mrb[0].mxu0
  %v125 = vadd.f32 %v74, %v124
  %v126 = vpop.f32.mrb[0].mxu0
  %127 = vmatprep.mubr.bf16.mxu0 0
  %128 = vmatmul.mubr.bf16.gmra.mrb[0].mxu0 %v81
  %v129 = vpop.f32.mrb[0].mxu0
  %v130 = vadd.f32 %v74, %v129
  %v131 = vpop.f32.mrb[0].mxu0
  %v132 = vpop.f32.mrb[0].mxu0
  %v133 = vpop.f32.mrb[0].mxu0
  %134 = vdwg.mxu0
  %v135 = vmax.f32 %v122, 0.0
  %v136 = vmax.f32 %v125, 0.0
  %v137 = vmax.f32 %v130, 0.0
  %vm140 = vcmask 1043456
  %v141 = vrot.slane %v136, 4
  %v142 = vrot.slane %v137, 4
  %v143 = vsel %vm140, %v141, %v142
  %v146 = vmax.f32 %v135, %v143
  %v147 = vmax.f32 %v136, %v142
  %v148 = vpack.c.bf16 %v147, %v146
  %v149 = vld [vmem:[%s5] sm:$0x1]
  %v151 = vlaneseq
  %v152 = vshrl.u32 %v151, 7
  %v153 = vsub.s32 0, %v152
  %v154 = vrot.slane %v149, %v153
  %vm156 = vcmask 261120
  %v158 = vsel %vm156, %v148, 0
  %160 = vmatprep.subr.bf16.mxu0 0
  %161 = vmatpush1.bf16.msra.mxu0 %v50
  %162 = vmatprep.subr.bf16.mxu0 0
  %163 = vmatpush1.bf16.msra.mxu0 %v51
  %164 = vmatprep.subr.bf16.mxu0 0
  %165 = vmatpush1.bf16.msra.mxu0 0
  %166 = vmatprep.subr.bf16.mxu0 0
  %167 = vmatpush1.bf16.msra.mxu0 0
  %168 = vmatprep.subr.bf16.mxu0 0
  %169 = vmatpush1.bf16.msra.mxu0 0
  %170 = vmatprep.subr.bf16.mxu0 0
  %171 = vmatpush1.bf16.msra.mxu0 0
  %172 = vmatprep.subr.bf16.mxu0 0
  %173 = vmatpush1.bf16.msra.mxu0 0
  %174 = vmatprep.subr.bf16.mxu0 0
  %175 = vmatpush1.bf16.msra.mxu0 0
  %176 = vmatprep.subr.bf16.mxu0 0
  %177 = vmatpush1.bf16.msra.mxu0 0
  %178 = vmatprep.subr.bf16.mxu0 0
  %179 = vmatpush1.bf16.msra.mxu0 0
  %180 = vmatprep.subr.bf16.mxu0 0
  %181 = vmatpush1.bf16.msra.mxu0 0
  %182 = vmatprep.subr.bf16.mxu0 0
  %183 = vmatpush1.bf16.msra.mxu0 0
  %184 = vmatprep.subr.bf16.mxu0 0
  %185 = vmatpush1.bf16.msra.mxu0 0
  %186 = vmatprep.subr.bf16.mxu0 0
  %187 = vmatpush1.bf16.msra.mxu0 0
  %188 = vmatprep.subr.bf16.mxu0 0
  %189 = vmatpush1.bf16.msra.mxu0 0
  %190 = vmatprep.subr.bf16.mxu0 0
  %191 = vmatpush1.bf16.msra.mxu0 0
  %192 = vmatprep.mubr.bf16.mxu0 0
  %193 = vmatmul.mubr.bf16.gmra.mrb[0].mxu0 %v158
  %v194 = vpop.f32.mrb[0].mxu0
  %v195 = vadd.f32 %v154, %v194
  %v196 = vpop.f32.mrb[0].mxu0
  %v197 = vpop.f32.mrb[0].mxu0
  %v198 = vadd.f32 %v154, %v197
  %v199 = vpop.f32.mrb[0].mxu0
  %200 = vdwg.mxu0
  %v202 = vsel %vm156, 0, 0
  %204 = vmatprep.subr.bf16.mxu0 0
  %205 = vmatpush1.bf16.msra.mxu0 %v56
  %206 = vmatprep.subr.bf16.mxu0 0
  %207 = vmatpush1.bf16.msra.mxu0 %v57
  %208 = vmatprep.subr.bf16.mxu0 0
  %209 = vmatpush1.bf16.msra.mxu0 0
  %210 = vmatprep.subr.bf16.mxu0 0
  %211 = vmatpush1.bf16.msra.mxu0 0
  %212 = vmatprep.subr.bf16.mxu0 0
  %213 = vmatpush1.bf16.msra.mxu0 0
  %214 = vmatprep.subr.bf16.mxu0 0
  %215 = vmatpush1.bf16.msra.mxu0 0
  %216 = vmatprep.subr.bf16.mxu0 0
  %217 = vmatpush1.bf16.msra.mxu0 0
  %218 = vmatprep.subr.bf16.mxu0 0
  %219 = vmatpush1.bf16.msra.mxu0 0
  %220 = vmatprep.subr.bf16.mxu0 0
  %221 = vmatpush1.bf16.msra.mxu0 0
  %222 = vmatprep.subr.bf16.mxu0 0
  %223 = vmatpush1.bf16.msra.mxu0 0
  %224 = vmatprep.subr.bf16.mxu0 0
  %225 = vmatpush1.bf16.msra.mxu0 0
  %226 = vmatprep.subr.bf16.mxu0 0
  %227 = vmatpush1.bf16.msra.mxu0 0
  %228 = vmatprep.subr.bf16.mxu0 0
  %229 = vmatpush1.bf16.msra.mxu0 0
  %230 = vmatprep.subr.bf16.mxu0 0
  %231 = vmatpush1.bf16.msra.mxu0 0
  %232 = vmatprep.subr.bf16.mxu0 0
  %233 = vmatpush1.bf16.msra.mxu0 0
  %234 = vmatprep.subr.bf16.mxu0 0
  %235 = vmatpush1.bf16.msra.mxu0 0
  %236 = vmatprep.mubr.bf16.mxu0 0
  %237 = vmatmul.mubr.bf16.gmra.mrb[0].mxu0 %v202
  %v238 = vpop.f32.mrb[0].mxu0
  %v239 = vadd.f32 0.0, %v238
  %v240 = vpop.f32.mrb[0].mxu0
  %v241 = vpop.f32.mrb[0].mxu0
  %v242 = vpop.f32.mrb[0].mxu0
  %243 = vdwg.mxu0
  %v244 = vadd.f32 %v195, %v239
  %v245 = vxor.u32 %v244, 2147483648
  %v246 = vmul.f32 %v245, 1.442695
  %v247 = vpow.pop %v246
  %v248 = vadd.f32 %v247, 1.0
  %v249 = vrcp.pop %v248
  %v250 = vmul.f32 1.0, %v249
  %v251 = vtanh.pop %v244
  %v252 = vmul.f32 %v250, 0.0
  %254 = vrot.lane.b32.xlu0 %v251, 32
  %v255 = vpop.permute.xlu0 %254
  %v257 = vmul.f32 %v250, %v255
  %259 = vrot.lane.b32.xlu0 %v257, 32
  %v260 = vpop.permute.xlu0 %259
  %v262 = vadd.f32 %v252, %v260
  %v263 = vtanh.pop %v262
  %265 = vrot.lane.b32.xlu0 %v263, 32
  %v266 = vpop.permute.xlu0 %265
  %v268 = vmul.f32 %v250, %v266
  %v269 = vpack.c.bf16 %v268, %v268
  %271 = vrot.lane.b32.xlu0 %v269, 64
  %v272 = vpop.permute.xlu0 %271
  %v274 = vsel %vm156, %v272, 0
  %276 = vmatprep.subr.bf16.mxu0 0
  %277 = vmatpush1.bf16.msra.mxu0 %v56
  %278 = vmatprep.subr.bf16.mxu0 0
  %279 = vmatpush1.bf16.msra.mxu0 %v57
  %280 = vmatprep.subr.bf16.mxu0 0
  %281 = vmatpush1.bf16.msra.mxu0 0
  %282 = vmatprep.subr.bf16.mxu0 0
  %283 = vmatpush1.bf16.msra.mxu0 0
  %284 = vmatprep.subr.bf16.mxu0 0
  %285 = vmatpush1.bf16.msra.mxu0 0
  %286 = vmatprep.subr.bf16.mxu0 0
  %287 = vmatpush1.bf16.msra.mxu0 0
  %288 = vmatprep.subr.bf16.mxu0 0
  %289 = vmatpush1.bf16.msra.mxu0 0
  %290 = vmatprep.subr.bf16.mxu0 0
  %291 = vmatpush1.bf16.msra.mxu0 0
  %292 = vmatprep.subr.bf16.mxu0 0
  %293 = vmatpush1.bf16.msra.mxu0 0
  %294 = vmatprep.subr.bf16.mxu0 0
  %295 = vmatpush1.bf16.msra.mxu0 0
  %296 = vmatprep.subr.bf16.mxu0 0
  %297 = vmatpush1.bf16.msra.mxu0 0
  %298 = vmatprep.subr.bf16.mxu0 0
  %299 = vmatpush1.bf16.msra.mxu0 0
  %300 = vmatprep.subr.bf16.mxu0 0
  %301 = vmatpush1.bf16.msra.mxu0 0
  %302 = vmatprep.subr.bf16.mxu0 0
  %303 = vmatpush1.bf16.msra.mxu0 0
  %304 = vmatprep.subr.bf16.mxu0 0
  %305 = vmatpush1.bf16.msra.mxu0 0
  %306 = vmatprep.subr.bf16.mxu0 0
  %307 = vmatpush1.bf16.msra.mxu0 0
  %308 = vmatprep.mubr.bf16.mxu0 0
  %309 = vmatmul.mubr.bf16.gmra.mrb[0].mxu0 %v274
  %v310 = vpop.f32.mrb[0].mxu0
  %v311 = vadd.f32 0.0, %v310
  %v312 = vpop.f32.mrb[0].mxu0
  %v313 = vpop.f32.mrb[0].mxu0
  %v314 = vpop.f32.mrb[0].mxu0
  %315 = vdwg.mxu0
  %v317 = vrot.slane %v311, 6
  %v319 = vadd.f32 %v195, %v317
  %v320 = vxor.u32 %v319, 2147483648
  %v321 = vmul.f32 %v320, 1.442695
  %v322 = vpow.pop %v321
  %v323 = vadd.f32 %v322, 1.0
  %v324 = vrcp.pop %v323
  %v325 = vmul.f32 1.0, %v324
  %v326 = vtanh.pop %v319
  %v328 = vrot.slane %v262, 6
  %v330 = vmul.f32 %v325, %v328
  %332 = vrot.lane.b32.xlu0 %v326, 32
  %v333 = vpop.permute.xlu0 %332
  %v335 = vmul.f32 %v325, %v333
  %337 = vrot.lane.b32.xlu0 %v335, 32
  %v338 = vpop.permute.xlu0 %337
  %v340 = vadd.f32 %v330, %v338
  %v341 = vtanh.pop %v340
  %343 = vrot.lane.b32.xlu0 %v341, 32
  %v344 = vpop.permute.xlu0 %343
  %v346 = vmul.f32 %v325, %v344
  %v347 = vpack.c.bf16 %v346, %v346
  %v349 = vrot.slane %v347, 1
  %350 = vrot.lane.b32.xlu0 %v349, 64
  %v351 = vpop.permute.xlu0 %350
  %v353 = vsel %vm156, %v351, 0
  %355 = vmatprep.subr.bf16.mxu0 0
  %356 = vmatpush1.bf16.msra.mxu0 %v56
  %357 = vmatprep.subr.bf16.mxu0 0
  %358 = vmatpush1.bf16.msra.mxu0 %v57
  %359 = vmatprep.subr.bf16.mxu0 0
  %360 = vmatpush1.bf16.msra.mxu0 0
  %361 = vmatprep.subr.bf16.mxu0 0
  %362 = vmatpush1.bf16.msra.mxu0 0
  %363 = vmatprep.subr.bf16.mxu0 0
  %364 = vmatpush1.bf16.msra.mxu0 0
  %365 = vmatprep.subr.bf16.mxu0 0
  %366 = vmatpush1.bf16.msra.mxu0 0
  %367 = vmatprep.subr.bf16.mxu0 0
  %368 = vmatpush1.bf16.msra.mxu0 0
  %369 = vmatprep.subr.bf16.mxu0 0
  %370 = vmatpush1.bf16.msra.mxu0 0
  %371 = vmatprep.subr.bf16.mxu0 0
  %372 = vmatpush1.bf16.msra.mxu0 0
  %373 = vmatprep.subr.bf16.mxu0 0
  %374 = vmatpush1.bf16.msra.mxu0 0
  %375 = vmatprep.subr.bf16.mxu0 0
  %376 = vmatpush1.bf16.msra.mxu0 0
  %377 = vmatprep.subr.bf16.mxu0 0
  %378 = vmatpush1.bf16.msra.mxu0 0
  %379 = vmatprep.subr.bf16.mxu0 0
  %380 = vmatpush1.bf16.msra.mxu0 0
  %381 = vmatprep.subr.bf16.mxu0 0
  %382 = vmatpush1.bf16.msra.mxu0 0
  %383 = vmatprep.subr.bf16.mxu0 0
  %384 = vmatpush1.bf16.msra.mxu0 0
  %385 = vmatprep.subr.bf16.mxu0 0
  %386 = vmatpush1.bf16.msra.mxu0 0
  %387 = vmatprep.mubr.bf16.mxu0 0
  %388 = vmatmul.mubr.bf16.gmra.mrb[0].mxu0 %v353
  %v389 = vpop.f32.mrb[0].mxu0
  %v390 = vadd.f32 0.0, %v389
  %v391 = vpop.f32.mrb[0].mxu0
  %v392 = vpop.f32.mrb[0].mxu0
  %v393 = vpop.f32.mrb[0].mxu0
  %394 = vdwg.mxu0
  %v396 = vrot.slane %v390, 4
  %v398 = vadd.f32 %v195, %v396
  %v399 = vxor.u32 %v398, 2147483648
  %v400 = vmul.f32 %v399, 1.442695
  %v401 = vpow.pop %v400
  %v402 = vadd.f32 %v401, 1.0
  %v403 = vrcp.pop %v402
  %v404 = vmul.f32 1.0, %v403
  %v405 = vtanh.pop %v398
  %v407 = vrot.slane %v340, 6
  %v409 = vmul.f32 %v404, %v407
  %411 = vrot.lane.b32.xlu0 %v405, 32
  %v412 = vpop.permute.xlu0 %411
  %v414 = vmul.f32 %v404, %v412
  %416 = vrot.lane.b32.xlu0 %v414, 32
  %v417 = vpop.permute.xlu0 %416
  %v419 = vadd.f32 %v409, %v417
  %v420 = vtanh.pop %v419
  %422 = vrot.lane.b32.xlu0 %v420, 32
  %v423 = vpop.permute.xlu0 %422
  %v425 = vmul.f32 %v404, %v423
  %v426 = vpack.c.bf16 %v425, %v425
  %v428 = vrot.slane %v426, 2
  %429 = vrot.lane.b32.xlu0 %v428, 64
  %v430 = vpop.permute.xlu0 %429
  %v432 = vsel %vm156, %v430, 0
  %434 = vmatprep.subr.bf16.mxu0 0
  %435 = vmatpush1.bf16.msra.mxu0 %v56
  %436 = vmatprep.subr.bf16.mxu0 0
  %437 = vmatpush1.bf16.msra.mxu0 %v57
  %438 = vmatprep.subr.bf16.mxu0 0
  %439 = vmatpush1.bf16.msra.mxu0 0
  %440 = vmatprep.subr.bf16.mxu0 0
  %441 = vmatpush1.bf16.msra.mxu0 0
  %442 = vmatprep.subr.bf16.mxu0 0
  %443 = vmatpush1.bf16.msra.mxu0 0
  %444 = vmatprep.subr.bf16.mxu0 0
  %445 = vmatpush1.bf16.msra.mxu0 0
  %446 = vmatprep.subr.bf16.mxu0 0
  %447 = vmatpush1.bf16.msra.mxu0 0
  %448 = vmatprep.subr.bf16.mxu0 0
  %449 = vmatpush1.bf16.msra.mxu0 0
  %450 = vmatprep.subr.bf16.mxu0 0
  %451 = vmatpush1.bf16.msra.mxu0 0
  %452 = vmatprep.subr.bf16.mxu0 0
  %453 = vmatpush1.bf16.msra.mxu0 0
  %454 = vmatprep.subr.bf16.mxu0 0
  %455 = vmatpush1.bf16.msra.mxu0 0
  %456 = vmatprep.subr.bf16.mxu0 0
  %457 = vmatpush1.bf16.msra.mxu0 0
  %458 = vmatprep.subr.bf16.mxu0 0
  %459 = vmatpush1.bf16.msra.mxu0 0
  %460 = vmatprep.subr.bf16.mxu0 0
  %461 = vmatpush1.bf16.msra.mxu0 0
  %462 = vmatprep.subr.bf16.mxu0 0
  %463 = vmatpush1.bf16.msra.mxu0 0
  %464 = vmatprep.subr.bf16.mxu0 0
  %465 = vmatpush1.bf16.msra.mxu0 0
  %466 = vmatprep.mubr.bf16.mxu0 0
  %467 = vmatmul.mubr.bf16.gmra.mrb[0].mxu0 %v432
  %v468 = vpop.f32.mrb[0].mxu0
  %v469 = vadd.f32 0.0, %v468
  %v470 = vpop.f32.mrb[0].mxu0
  %v471 = vpop.f32.mrb[0].mxu0
  %v472 = vpop.f32.mrb[0].mxu0
  %473 = vdwg.mxu0
  %v475 = vrot.slane %v469, 2
  %v477 = vadd.f32 %v195, %v475
  %v478 = vxor.u32 %v477, 2147483648
  %v479 = vmul.f32 %v478, 1.442695
  %v480 = vpow.pop %v479
  %v481 = vadd.f32 %v480, 1.0
  %v482 = vrcp.pop %v481
  %v483 = vmul.f32 1.0, %v482
  %v484 = vtanh.pop %v477
  %v486 = vrot.slane %v419, 6
  %v488 = vmul.f32 %v483, %v486
  %490 = vrot.lane.b32.xlu0 %v484, 32
  %v491 = vpop.permute.xlu0 %490
  %v493 = vmul.f32 %v483, %v491
  %495 = vrot.lane.b32.xlu0 %v493, 32
  %v496 = vpop.permute.xlu0 %495
  %v498 = vadd.f32 %v488, %v496
  %v499 = vtanh.pop %v498
  %501 = vrot.lane.b32.xlu0 %v499, 32
  %v502 = vpop.permute.xlu0 %501
  %v504 = vmul.f32 %v483, %v502
  %v505 = vpack.c.bf16 %v504, %v504
  %v507 = vrot.slane %v505, 3
  %508 = vrot.lane.b32.xlu0 %v507, 64
  %v509 = vpop.permute.xlu0 %508
  %v511 = vsel %vm156, %v509, 0
  %513 = vmatprep.subr.bf16.mxu0 0
  %514 = vmatpush1.bf16.msra.mxu0 %v56
  %515 = vmatprep.subr.bf16.mxu0 0
  %516 = vmatpush1.bf16.msra.mxu0 %v57
  %517 = vmatprep.subr.bf16.mxu0 0
  %518 = vmatpush1.bf16.msra.mxu0 0
  %519 = vmatprep.subr.bf16.mxu0 0
  %520 = vmatpush1.bf16.msra.mxu0 0
  %521 = vmatprep.subr.bf16.mxu0 0
  %522 = vmatpush1.bf16.msra.mxu0 0
  %523 = vmatprep.subr.bf16.mxu0 0
  %524 = vmatpush1.bf16.msra.mxu0 0
  %525 = vmatprep.subr.bf16.mxu0 0
  %526 = vmatpush1.bf16.msra.mxu0 0
  %527 = vmatprep.subr.bf16.mxu0 0
  %528 = vmatpush1.bf16.msra.mxu0 0
  %529 = vmatprep.subr.bf16.mxu0 0
  %530 = vmatpush1.bf16.msra.mxu0 0
  %531 = vmatprep.subr.bf16.mxu0 0
  %532 = vmatpush1.bf16.msra.mxu0 0
  %533 = vmatprep.subr.bf16.mxu0 0
  %534 = vmatpush1.bf16.msra.mxu0 0
  %535 = vmatprep.subr.bf16.mxu0 0
  %536 = vmatpush1.bf16.msra.mxu0 0
  %537 = vmatprep.subr.bf16.mxu0 0
  %538 = vmatpush1.bf16.msra.mxu0 0
  %539 = vmatprep.subr.bf16.mxu0 0
  %540 = vmatpush1.bf16.msra.mxu0 0
  %541 = vmatprep.subr.bf16.mxu0 0
  %542 = vmatpush1.bf16.msra.mxu0 0
  %543 = vmatprep.subr.bf16.mxu0 0
  %544 = vmatpush1.bf16.msra.mxu0 0
  %545 = vmatprep.mubr.bf16.mxu0 0
  %546 = vmatmul.mubr.bf16.gmra.mrb[0].mxu0 %v511
  %v547 = vpop.f32.mrb[0].mxu0
  %v548 = vadd.f32 0.0, %v547
  %v549 = vpop.f32.mrb[0].mxu0
  %v550 = vpop.f32.mrb[0].mxu0
  %v551 = vpop.f32.mrb[0].mxu0
  %552 = vdwg.mxu0
  %v553 = vadd.f32 %v198, %v548
  %v554 = vxor.u32 %v553, 2147483648
  %v555 = vmul.f32 %v554, 1.442695
  %v556 = vpow.pop %v555
  %v557 = vadd.f32 %v556, 1.0
  %v558 = vrcp.pop %v557
  %v559 = vmul.f32 1.0, %v558
  %v560 = vtanh.pop %v553
  %v562 = vrot.slane %v498, 6
  %v564 = vmul.f32 %v559, %v562
  %566 = vrot.lane.b32.xlu0 %v560, 32
  %v567 = vpop.permute.xlu0 %566
  %v569 = vmul.f32 %v559, %v567
  %571 = vrot.lane.b32.xlu0 %v569, 32
  %v572 = vpop.permute.xlu0 %571
  %v574 = vadd.f32 %v564, %v572
  %v575 = vtanh.pop %v574
  %577 = vrot.lane.b32.xlu0 %v575, 32
  %v578 = vpop.permute.xlu0 %577
  %v580 = vmul.f32 %v559, %v578
  %v581 = vpack.c.bf16 %v580, %v580
  %583 = vrot.lane.b32.xlu0 %v581, 64
  %v584 = vpop.permute.xlu0 %583
  %v586 = vsel %vm156, %v584, 0
  %588 = vmatprep.subr.bf16.mxu0 0
  %589 = vmatpush1.bf16.msra.mxu0 %v56
  %590 = vmatprep.subr.bf16.mxu0 0
  %591 = vmatpush1.bf16.msra.mxu0 %v57
  %592 = vmatprep.subr.bf16.mxu0 0
  %593 = vmatpush1.bf16.msra.mxu0 0
  %594 = vmatprep.subr.bf16.mxu0 0
  %595 = vmatpush1.bf16.msra.mxu0 0
  %596 = vmatprep.subr.bf16.mxu0 0
  %597 = vmatpush1.bf16.msra.mxu0 0
  %598 = vmatprep.subr.bf16.mxu0 0
  %599 = vmatpush1.bf16.msra.mxu0 0
  %600 = vmatprep.subr.bf16.mxu0 0
  %601 = vmatpush1.bf16.msra.mxu0 0
  %602 = vmatprep.subr.bf16.mxu0 0
  %603 = vmatpush1.bf16.msra.mxu0 0
  %604 = vmatprep.subr.bf16.mxu0 0
  %605 = vmatpush1.bf16.msra.mxu0 0
  %606 = vmatprep.subr.bf16.mxu0 0
  %607 = vmatpush1.bf16.msra.mxu0 0
  %608 = vmatprep.subr.bf16.mxu0 0
  %609 = vmatpush1.bf16.msra.mxu0 0
  %610 = vmatprep.subr.bf16.mxu0 0
  %611 = vmatpush1.bf16.msra.mxu0 0
  %612 = vmatprep.subr.bf16.mxu0 0
  %613 = vmatpush1.bf16.msra.mxu0 0
  %614 = vmatprep.subr.bf16.mxu0 0
  %615 = vmatpush1.bf16.msra.mxu0 0
  %616 = vmatprep.subr.bf16.mxu0 0
  %617 = vmatpush1.bf16.msra.mxu0 0
  %618 = vmatprep.subr.bf16.mxu0 0
  %619 = vmatpush1.bf16.msra.mxu0 0
  %620 = vmatprep.mubr.bf16.mxu0 0
  %621 = vmatmul.mubr.bf16.gmra.mrb[0].mxu0 %v586
  %v622 = vpop.f32.mrb[0].mxu0
  %v623 = vadd.f32 0.0, %v622
  %v624 = vpop.f32.mrb[0].mxu0
  %v625 = vpop.f32.mrb[0].mxu0
  %v626 = vpop.f32.mrb[0].mxu0
  %627 = vdwg.mxu0
  %v629 = vrot.slane %v623, 6
  %v631 = vadd.f32 %v198, %v629
  %v632 = vxor.u32 %v631, 2147483648
  %v633 = vmul.f32 %v632, 1.442695
  %v634 = vpow.pop %v633
  %v635 = vadd.f32 %v634, 1.0
  %v636 = vrcp.pop %v635
  %v637 = vmul.f32 1.0, %v636
  %v638 = vtanh.pop %v631
  %v640 = vrot.slane %v574, 6
  %v642 = vmul.f32 %v637, %v640
  %644 = vrot.lane.b32.xlu0 %v638, 32
  %v645 = vpop.permute.xlu0 %644
  %v647 = vmul.f32 %v637, %v645
  %649 = vrot.lane.b32.xlu0 %v647, 32
  %v650 = vpop.permute.xlu0 %649
  %v652 = vadd.f32 %v642, %v650
  %v653 = vtanh.pop %v652
  %655 = vrot.lane.b32.xlu0 %v653, 32
  %v656 = vpop.permute.xlu0 %655
  %v658 = vmul.f32 %v637, %v656
  %v659 = vpack.c.bf16 %v658, %v658
  %v660 = vld [vmem:[%s7] sm:$0x1]
  %v662 = vlaneseq
  %v663 = vshrl.u32 %v662, 7
  %v664 = vsub.s32 0, %v663
  %v665 = vrot.slane %v660, %v664
  %v668 = vrot.slane %v659, 1
  %669 = vrot.lane.b32.xlu0 %v668, 64
  %v670 = vpop.permute.xlu0 %669
  %v672 = vsel %vm156, %v670, 0
  %674 = vmatprep.subr.bf16.mxu0 0
  %675 = vmatpush1.bf16.msra.mxu0 %v62
  %676 = vmatprep.subr.bf16.mxu0 0
  %677 = vmatpush1.bf16.msra.mxu0 %v63
  %678 = vmatprep.subr.bf16.mxu0 0
  %679 = vmatpush1.bf16.msra.mxu0 0
  %680 = vmatprep.subr.bf16.mxu0 0
  %681 = vmatpush1.bf16.msra.mxu0 0
  %682 = vmatprep.subr.bf16.mxu0 0
  %683 = vmatpush1.bf16.msra.mxu0 0
  %684 = vmatprep.subr.bf16.mxu0 0
  %685 = vmatpush1.bf16.msra.mxu0 0
  %686 = vmatprep.subr.bf16.mxu0 0
  %687 = vmatpush1.bf16.msra.mxu0 0
  %688 = vmatprep.subr.bf16.mxu0 0
  %689 = vmatpush1.bf16.msra.mxu0 0
  %690 = vmatprep.subr.bf16.mxu0 0
  %691 = vmatpush1.bf16.msra.mxu0 0
  %692 = vmatprep.subr.bf16.mxu0 0
  %693 = vmatpush1.bf16.msra.mxu0 0
  %694 = vmatprep.subr.bf16.mxu0 0
  %695 = vmatpush1.bf16.msra.mxu0 0
  %696 = vmatprep.subr.bf16.mxu0 0
  %697 = vmatpush1.bf16.msra.mxu0 0
  %698 = vmatprep.subr.bf16.mxu0 0
  %699 = vmatpush1.bf16.msra.mxu0 0
  %700 = vmatprep.subr.bf16.mxu0 0
  %701 = vmatpush1.bf16.msra.mxu0 0
  %702 = vmatprep.subr.bf16.mxu0 0
  %703 = vmatpush1.bf16.msra.mxu0 0
  %704 = vmatprep.subr.bf16.mxu0 0
  %705 = vmatpush1.bf16.msra.mxu0 0
  %706 = vmatprep.mubr.bf16.mxu0 0
  %707 = vmatmul.mubr.bf16.gmra.mrb[0].mxu0 %v672
  %v708 = vpop.f32.mrb[0].mxu0
  %v709 = vadd.f32 %v665, %v708
  %v710 = vpop.f32.mrb[0].mxu0
  %v711 = vpop.f32.mrb[0].mxu0
  %v712 = vpop.f32.mrb[0].mxu0
  %713 = vdwg.mxu0
  %v714 = vmax.f32 %v709, 0.0
  %v715 = vpack.c.bf16 %v714, %v714
  %v716 = vld [vmem:[#allocation2] sm:$0x1]
  %v718 = vlaneseq
  %v719 = vshrl.u32 %v718, 7
  %v720 = vsub.s32 0, %v719
  %v721 = vrot.slane %v716, %v720
  %vm723 = vcmask 130048
  %v725 = vsel %vm723, %v715, 0
  %727 = vmatprep.subr.bf16.mxu0 0
  %728 = vmatpush1.bf16.msra.mxu0 %v66
  %729 = vmatprep.subr.bf16.mxu0 0
  %730 = vmatpush1.bf16.msra.mxu0 0
  %731 = vmatprep.subr.bf16.mxu0 0
  %732 = vmatpush1.bf16.msra.mxu0 0
  %733 = vmatprep.subr.bf16.mxu0 0
  %734 = vmatpush1.bf16.msra.mxu0 0
  %735 = vmatprep.subr.bf16.mxu0 0
  %736 = vmatpush1.bf16.msra.mxu0 0
  %737 = vmatprep.subr.bf16.mxu0 0
  %738 = vmatpush1.bf16.msra.mxu0 0
  %739 = vmatprep.subr.bf16.mxu0 0
  %740 = vmatpush1.bf16.msra.mxu0 0
  %741 = vmatprep.subr.bf16.mxu0 0
  %742 = vmatpush1.bf16.msra.mxu0 0
  %743 = vmatprep.subr.bf16.mxu0 0
  %744 = vmatpush1.bf16.msra.mxu0 0
  %745 = vmatprep.subr.bf16.mxu0 0
  %746 = vmatpush1.bf16.msra.mxu0 0
  %747 = vmatprep.subr.bf16.mxu0 0
  %748 = vmatpush1.bf16.msra.mxu0 0
  %749 = vmatprep.subr.bf16.mxu0 0
  %750 = vmatpush1.bf16.msra.mxu0 0
  %751 = vmatprep.subr.bf16.mxu0 0
  %752 = vmatpush1.bf16.msra.mxu0 0
  %753 = vmatprep.subr.bf16.mxu0 0
  %754 = vmatpush1.bf16.msra.mxu0 0
  %755 = vmatprep.subr.bf16.mxu0 0
  %756 = vmatpush1.bf16.msra.mxu0 0
  %757 = vmatprep.subr.bf16.mxu0 0
  %758 = vmatpush1.bf16.msra.mxu0 0
  %759 = vmatprep.mubr.bf16.mxu0 0
  %760 = vmatmul.mubr.bf16.gmra.mrb[0].mxu0 %v725
  %v761 = vpop.f32.mrb[0].mxu0
  %v762 = vadd.f32 %v721, %v761
  %v763 = vpop.f32.mrb[0].mxu0
  %v764 = vpop.f32.mrb[0].mxu0
  %v765 = vpop.f32.mrb[0].mxu0
  %766 = vdwg.mxu0
  %v767 = vxor.u32 %v762, 2147483648
  %v768 = vmul.f32 %v767, 1.442695
  %v769 = vpow.pop %v768
  %v770 = vadd.f32 %v769, 1.0
  %v771 = vrcp.pop %v770
  %v772 = vmul.f32 1.0, %v771
  %vm773 = vcmask 1024
  %774 = vst.msk [vmem:[%s10] sm:$0x3] %vm773, %v772
  // Predicated region
  $region42: #{tpu_custom_call.1} parent=0 // pred_check
    _
  $region43: #{tpu_custom_call.1} parent=0 // pred_check_branch
    %776 = sbr.rel (0) target = $region45
  $region44: #{tpu_custom_call.1} parent=0 // pred_region
    _
  $region45: #{tpu_custom_call.1} parent=0 // pred_fallthru
    _
  // Predicated region
  $region46: #{tpu_custom_call.1} parent=0 // pred_check
    _
  $region47: #{tpu_custom_call.1} parent=0 // pred_check_branch
    %778 = sbr.rel (0) target = $region49
  $region48: #{tpu_custom_call.1} parent=0 // pred_region
    _
  $region49: #{tpu_custom_call.1} parent=0 // pred_fallthru
    _

</llo_original>
